<compile_context>
chip_gen: v5e
topology: v5e:2x2
jax: 0.10.0
libtpu: 0.0.40
codegen_flags: <defaults>
</compile_context>

<pallas_src>
import jax
import jax.numpy as jnp
from jax.experimental import pallas as pl
from jax.experimental.pallas import tpu as pltpu

# ----------------------------------------------------------------------------
# Model configuration (mirrors LSTMNet.__init__)
#   input_size = len(features) + len(targets) = 3 + 1 = 4
#   hidden_size = 32, num_layers = 1 (dropout therefore 0), targets = 1
# ----------------------------------------------------------------------------
NUM_FEATURES = 3
NUM_TARGETS = 1
INPUT_SIZE = NUM_FEATURES + NUM_TARGETS   # 4
HIDDEN_SIZE = 32
NUM_LAYERS = 1
BATCH = 2
SEQ_LEN = 8
MAX_BATCH_TILE = 64      # cap: bounds vreg pressure in the fully unrolled recurrence
OUT_LANES = 128          # lane-dense output slab (col 0 holds the real result)


def lstm_net_kernel(x_ref, wih_ref, whh_ref, b_ref, wlin_ref, blin_ref, out_ref):
    """LSTM forward over T steps + final Linear on the last hidden state.

    x_ref:    (1, T*TB, D)   f32   per-tile input, rows ordered [t*TB + j]
    wih_ref:  (D, 4H)        bf16  W_ih^T, gate column order [i | f | o | g]
    whh_ref:  (H, 4H)        bf16  W_hh^T, same gate order
    b_ref:    (1, 4H)        f32   b_ih + b_hh, same gate order
    wlin_ref: (O, H)         f32   linear weight as a row (O = 1)
    blin_ref: (1, O)         f32
    out_ref:  (TB, 128)      f32   lane-dense output slab (col 0 sliced outside)
    """
    _, TBT, D = x_ref.shape
    H = whh_ref.shape[0]
    TB = out_ref.shape[0]
    T = TBT // TB

    whh = whh_ref[...]                      # (H, 4H) bf16, held across all steps

    # ---- Phase 1 (off the serial path): ONE fused MXU matmul for every time step's
    # input projection; bias added via sublane broadcast (no (TB,4H) materialization).
    x2 = x_ref[0].astype(jnp.bfloat16)      # (T*TB, D)
    xp = jnp.dot(x2, wih_ref[...], preferred_element_type=jnp.float32) + b_ref[...]

    # Gate order is [i | f | o | g]: lanes < 3H use sigmoid, lanes >= 3H use tanh.
    lane = jax.lax.broadcasted_iota(jnp.int32, (TB, 4 * H), 1)
    sig_mask = lane < 3 * H

    # ---- Phase 2: serial recurrence. T is small & static -> fully unrolled, with
    # ONE MXU matmul and ONE full-lane EUP tanh pass per step on the critical path.
    h = jnp.zeros((TB, H), jnp.float32)
    c = jnp.zeros((TB, H), jnp.float32)
    for t in range(T):
        gates = xp[t * TB:(t + 1) * TB] + jnp.dot(
            h.astype(jnp.bfloat16), whh, preferred_element_type=jnp.float32)
        # sigmoid(z) = 0.5*(tanh(z/2)+1): single tanh over all 4H lanes, VPU fixups.
        tz = jnp.tanh(jnp.where(sig_mask, 0.5 * gates, gates))
        act = jnp.where(sig_mask, 0.5 * (tz + 1.0), tz)
        i_g = act[:, 0 * H:1 * H]
        f_g = act[:, 1 * H:2 * H]
        o_g = act[:, 2 * H:3 * H]
        g_g = act[:, 3 * H:4 * H]
        c = f_g * c + i_g * g_g
        h = o_g * jnp.tanh(c)

    # ---- Epilogue: O=1 Linear as VPU multiply + lane reduction (no N=1 MXU matmul);
    # broadcast into a lane-dense (TB,128) slab so the store is an unmasked vst.
    y = jnp.sum(h * wlin_ref[...], axis=-1, keepdims=True) + blin_ref[...]   # (TB, 1)
    out_ref[...] = jnp.broadcast_to(y, out_ref.shape).astype(out_ref.dtype)


def _choose_batch_tile(B):
    """Batch tile: <=64 (vreg pressure), multiple of 8 when tiled, and >=2 grid
    steps for large batches so the 'parallel' axis can occupy both v7x TensorCores."""
    if B <= 8:
        return B                           # tiny batch: single tile (overhead bound)
    half = pl.cdiv(B, 2)
    return min(MAX_BATCH_TILE, pl.cdiv(half, 8) * 8)


def lstm_net_forward(x, kparams):
    """x: (B, T, D) batch_first. kparams: kernel-layout params (prepare_kernel_params)."""
    B, T, D = x.shape
    H = kparams["w_hh_t"].shape[0]
    O = kparams["b_lin"].shape[1]
    assert O == 1  # NUM_TARGETS == 1 in the reference module

    TB = _choose_batch_tile(B)
    B_pad = pl.cdiv(B, TB) * TB
    nb = B_pad // TB
    if B_pad != B:                                        # pad-and-slice for any B
        x = jnp.concatenate([x, jnp.zeros((B_pad - B, T, D), x.dtype)], axis=0)

    # Layout plumbing (wrapper side): per batch tile, rows ordered [t*TB + j] so the
    # kernel's fused projection and per-step static slices are contiguous.
    xt = x.reshape(nb, TB, T, D).transpose(0, 2, 1, 3).reshape(nb, T * TB, D)

    cost = pl.CostEstimate(
        flops=2 * B_pad * T * (D + H) * 4 * H + 2 * B_pad * H * O,
        transcendentals=5 * B_pad * T * H,                 # 4H gate tanh + H tanh(c)
        bytes_accessed=(4 * B_pad * T * D                  # x (f32)
                        + 2 * (D + H) * 4 * H              # bf16 weights
                        + 4 * (4 * H + H * O + O)          # f32 bias / linear params
                        + 4 * B_pad * OUT_LANES),          # padded output slab
    )

    out = pl.pallas_call(
        lstm_net_kernel,
        out_shape=jax.ShapeDtypeStruct((B_pad, OUT_LANES), jnp.float32),
        grid=(nb,),
        in_specs=[
            pl.BlockSpec((1, T * TB, D), lambda b: (b, 0, 0)),
            pl.BlockSpec((D, 4 * H), lambda b: (0, 0)),
            pl.BlockSpec((H, 4 * H), lambda b: (0, 0)),
            pl.BlockSpec((1, 4 * H), lambda b: (0, 0)),
            pl.BlockSpec((O, H), lambda b: (0, 0)),
            pl.BlockSpec((1, O), lambda b: (0, 0)),
        ],
        out_specs=pl.BlockSpec((TB, OUT_LANES), lambda b: (b, 0)),
        compiler_params=pltpu.CompilerParams(dimension_semantics=("parallel",)),
        cost_estimate=cost,
    )(xt, kparams["w_ih_t"], kparams["w_hh_t"], kparams["b"],
      kparams["w_lin_row"], kparams["b_lin"])

    return out[:B, :O]


def init_params(key):
    """PyTorch-layout params (gate row order i,f,g,o), uniform(-1/sqrt(H), 1/sqrt(H))."""
    H, D, O = HIDDEN_SIZE, INPUT_SIZE, NUM_TARGETS
    k = 1.0 / jnp.sqrt(jnp.float32(H))
    ks = jax.random.split(key, 6)
    return {
        "w_ih": jax.random.uniform(ks[0], (4 * H, D), jnp.float32, -k, k),
        "w_hh": jax.random.uniform(ks[1], (4 * H, H), jnp.float32, -k, k),
        "b_ih": jax.random.uniform(ks[2], (4 * H,), jnp.float32, -k, k),
        "b_hh": jax.random.uniform(ks[3], (4 * H,), jnp.float32, -k, k),
        "w_lin": jax.random.uniform(ks[4], (O, H), jnp.float32, -k, k),
        "b_lin": jax.random.uniform(ks[5], (O,), jnp.float32, -k, k),
    }


def prepare_kernel_params(p):
    """Reorder gate rows from PyTorch (i,f,g,o) to kernel layout (i,f,o,g), transpose,
    and cast the two MXU weight operands to bf16 (f32 accumulation in-kernel)."""
    H = HIDDEN_SIZE
    perm = jnp.concatenate([
        jnp.arange(0 * H, 1 * H),   # i
        jnp.arange(1 * H, 2 * H),   # f
        jnp.arange(3 * H, 4 * H),   # o
        jnp.arange(2 * H, 3 * H),   # g
    ])
    return {
        "w_ih_t": p["w_ih"][perm].T.astype(jnp.bfloat16),   # (D, 4H) bf16 MXU operand
        "w_hh_t": p["w_hh"][perm].T.astype(jnp.bfloat16),   # (H, 4H) bf16 MXU operand
        "b": (p["b_ih"] + p["b_hh"])[perm][None, :],         # (1, 4H) f32
        "w_lin_row": p["w_lin"],                             # (O, H) f32, VPU epilogue
        "b_lin": p["b_lin"][None, :],                        # (1, O) f32
    }


def reference_forward(x, p, *, match_kernel=False):
    """Pure-JAX reference with PyTorch gate order (i, f, g, o).

    match_kernel=False: plain f32 nn.LSTM + nn.Linear math.
    match_kernel=True : mirrors the kernel's numerics (bf16 MXU operands with f32
                        accumulation, sigmoid via 0.5*(tanh(z/2)+1)) for a tight check.
    """
    B, T, _ = x.shape
    H = HIDDEN_SIZE
    w_ih_t = p["w_ih"].T
    w_hh_t = p["w_hh"].T
    b = (p["b_ih"] + p["b_hh"])[None, :]

    if match_kernel:
        w_ih_t = w_ih_t.astype(jnp.bfloat16)
        w_hh_t = w_hh_t.astype(jnp.bfloat16)
        mm = lambda a, w: jnp.dot(a.astype(jnp.bfloat16), w,
                                  preferred_element_type=jnp.float32)
        sigmoid = lambda z: 0.5 * (jnp.tanh(0.5 * z) + 1.0)
    else:
        mm = lambda a, w: jnp.dot(a, w, preferred_element_type=jnp.float32)
        sigmoid = jax.nn.sigmoid

    h = jnp.zeros((B, H), jnp.float32)
    c = jnp.zeros((B, H), jnp.float32)
    for t in range(T):
        gates = mm(x[:, t, :], w_ih_t) + mm(h, w_hh_t) + b
        i_g = sigmoid(gates[:, 0 * H:1 * H])
        f_g = sigmoid(gates[:, 1 * H:2 * H])
        g_g = jnp.tanh(gates[:, 2 * H:3 * H])
        o_g = sigmoid(gates[:, 3 * H:4 * H])
        c = f_g * c + i_g * g_g
        h = o_g * jnp.tanh(c)
    return h @ p["w_lin"].T + p["b_lin"][None, :]


if __name__ == "__main__":
    key = jax.random.PRNGKey(0)
    k_param, k_x = jax.random.split(key)
    params = init_params(k_param)
    kparams = prepare_kernel_params(params)
    x = jax.random.normal(k_x, (BATCH, SEQ_LEN, INPUT_SIZE), jnp.float32)

    out = lstm_net_forward(x, kparams)
    out = jax.block_until_ready(out)
    assert out.shape == (BATCH, NUM_TARGETS)

    # Tight check vs a reference matching the kernel's bf16-operand matmuls and
    # tanh-based sigmoid (isolates structural bugs from bf16 rounding).
    ref_matched = reference_forward(x, params, match_kernel=True)
    assert jnp.allclose(out, ref_matched, atol=1e-4, rtol=1e-4), (out, ref_matched)

    # Loose check vs the pure-f32 PyTorch-semantics reference (bf16 MXU rounding).
    ref = reference_forward(x, params)
    assert jnp.allclose(out, ref, atol=2e-2, rtol=2e-2), (out, ref)

    print("KERNEL_OK")
</pallas_src>

<mosaic_0001>
module attributes {stable_mosaic.version = 11 : i64} {
  func.func @lstm_net_kernel(%arg0: i32, %arg1: memref<1x16x4xf32, #tpu.memory_space<vmem>>, %arg2: memref<4x128xbf16, #tpu.memory_space<vmem>>, %arg3: memref<32x128xbf16, #tpu.memory_space<vmem>>, %arg4: memref<1x128xf32, #tpu.memory_space<vmem>>, %arg5: memref<1x32xf32, #tpu.memory_space<vmem>>, %arg6: memref<1x1xf32, #tpu.memory_space<vmem>>, %arg7: memref<2x128xf32, #tpu.memory_space<vmem>>) attributes {dimension_semantics = [#tpu.dimension_semantics<parallel>], iteration_bounds = array<i64: 1>, scalar_prefetch = 0 : i64, scratch_operands = 0 : i64, tpu.core_type = #tpu.core_type<tc>, window_params = [{transform_indices = @transform_0, window_bounds = array<i64: 1, 16, 4>}, {pipeline_mode = #tpu.pipeline_mode<synchronous>, transform_indices = @transform_1, window_bounds = array<i64: 4, 128>}, {pipeline_mode = #tpu.pipeline_mode<synchronous>, transform_indices = @transform_2, window_bounds = array<i64: 32, 128>}, {pipeline_mode = #tpu.pipeline_mode<synchronous>, transform_indices = @transform_3, window_bounds = array<i64: 1, 128>}, {pipeline_mode = #tpu.pipeline_mode<synchronous>, transform_indices = @transform_4, window_bounds = array<i64: 1, 32>}, {pipeline_mode = #tpu.pipeline_mode<synchronous>, transform_indices = @transform_5, window_bounds = array<i64: 1, 1>}, {transform_indices = @transform_6, window_bounds = array<i64: 2, 128>}]} {
    %c0 = arith.constant 0 : index
    %c0_0 = arith.constant 0 : index
    %0 = vector.load %arg3[%c0, %c0_0] : memref<32x128xbf16, #tpu.memory_space<vmem>>, vector<32x128xbf16>
    %c0_1 = arith.constant 0 : index
    %c0_2 = arith.constant 0 : index
    %c0_3 = arith.constant 0 : index
    %1 = vector.load %arg1[%c0_1, %c0_2, %c0_3] : memref<1x16x4xf32, #tpu.memory_space<vmem>>, vector<1x16x4xf32>
    %2 = vector.shape_cast %1 : vector<1x16x4xf32> to vector<16x4xf32>
    %3 = arith.truncf %2 : vector<16x4xf32> to vector<16x4xbf16>
    %c0_4 = arith.constant 0 : index
    %c0_5 = arith.constant 0 : index
    %4 = vector.load %arg2[%c0_4, %c0_5] : memref<4x128xbf16, #tpu.memory_space<vmem>>, vector<4x128xbf16>
    %cst = arith.constant dense<0.000000e+00> : vector<16x128xf32>
    %5 = tpu.matmul %3, %4, %cst {dimension_numbers = #tpu.dot_dimension_numbers<[1], [0], [0], [1], [0, 0, 1, 1], [], []>} : vector<16x4xbf16>, vector<4x128xbf16>, vector<16x128xf32> -> vector<16x128xf32>
    %c0_6 = arith.constant 0 : index
    %c0_7 = arith.constant 0 : index
    %6 = vector.load %arg4[%c0_6, %c0_7] : memref<1x128xf32, #tpu.memory_space<vmem>>, vector<1x128xf32>
    %7 = vector.broadcast %6 : vector<1x128xf32> to vector<16x128xf32>
    %8 = arith.addf %5, %7 : vector<16x128xf32>
    %9 = tpu.iota {dimensions = array<i32: 1>} : vector<2x128xi32>
    %c96_i32 = arith.constant 96 : i32
    %10 = vector.broadcast %c96_i32 : i32 to vector<2x128xi32>
    %11 = arith.cmpi slt, %9, %10 : vector<2x128xi32>
    %cst_8 = arith.constant 0.000000e+00 : f32
    %12 = vector.broadcast %cst_8 : f32 to vector<2x32xf32>
    %cst_9 = arith.constant 0.000000e+00 : f32
    %13 = vector.broadcast %cst_9 : f32 to vector<2x32xf32>
    %14 = vector.extract_strided_slice %8 {offsets = [0, 0], sizes = [2, 128], strides = [1, 1]} : vector<16x128xf32> to vector<2x128xf32>
    %15 = arith.truncf %12 : vector<2x32xf32> to vector<2x32xbf16>
    %cst_10 = arith.constant dense<0.000000e+00> : vector<2x128xf32>
    %16 = tpu.matmul %15, %0, %cst_10 {dimension_numbers = #tpu.dot_dimension_numbers<[1], [0], [0], [1], [0, 0, 1, 1], [], []>} : vector<2x32xbf16>, vector<32x128xbf16>, vector<2x128xf32> -> vector<2x128xf32>
    %17 = arith.addf %14, %16 : vector<2x128xf32>
    %cst_11 = arith.constant 5.000000e-01 : f32
    %18 = vector.broadcast %cst_11 : f32 to vector<2x128xf32>
    %19 = arith.mulf %18, %17 : vector<2x128xf32>
    %20 = arith.select %11, %19, %17 : vector<2x128xi1>, vector<2x128xf32>
    %21 = math.tanh %20 : vector<2x128xf32>
    %cst_12 = arith.constant 1.000000e+00 : f32
    %22 = vector.broadcast %cst_12 : f32 to vector<2x128xf32>
    %23 = arith.addf %21, %22 : vector<2x128xf32>
    %cst_13 = arith.constant 5.000000e-01 : f32
    %24 = vector.broadcast %cst_13 : f32 to vector<2x128xf32>
    %25 = arith.mulf %24, %23 : vector<2x128xf32>
    %26 = arith.select %11, %25, %21 : vector<2x128xi1>, vector<2x128xf32>
    %27 = vector.extract_strided_slice %26 {offsets = [0, 0], sizes = [2, 32], strides = [1, 1]} : vector<2x128xf32> to vector<2x32xf32>
    %28 = vector.extract_strided_slice %26 {offsets = [0, 32], sizes = [2, 32], strides = [1, 1]} : vector<2x128xf32> to vector<2x32xf32>
    %29 = vector.extract_strided_slice %26 {offsets = [0, 64], sizes = [2, 32], strides = [1, 1]} : vector<2x128xf32> to vector<2x32xf32>
    %30 = vector.extract_strided_slice %26 {offsets = [0, 96], sizes = [2, 32], strides = [1, 1]} : vector<2x128xf32> to vector<2x32xf32>
    %31 = arith.mulf %28, %13 : vector<2x32xf32>
    %32 = arith.mulf %27, %30 : vector<2x32xf32>
    %33 = arith.addf %31, %32 : vector<2x32xf32>
    %34 = math.tanh %33 : vector<2x32xf32>
    %35 = arith.mulf %29, %34 : vector<2x32xf32>
    %36 = vector.extract_strided_slice %8 {offsets = [2, 0], sizes = [2, 128], strides = [1, 1]} : vector<16x128xf32> to vector<2x128xf32>
    %37 = arith.truncf %35 : vector<2x32xf32> to vector<2x32xbf16>
    %cst_14 = arith.constant dense<0.000000e+00> : vector<2x128xf32>
    %38 = tpu.matmul %37, %0, %cst_14 {dimension_numbers = #tpu.dot_dimension_numbers<[1], [0], [0], [1], [0, 0, 1, 1], [], []>} : vector<2x32xbf16>, vector<32x128xbf16>, vector<2x128xf32> -> vector<2x128xf32>
    %39 = arith.addf %36, %38 : vector<2x128xf32>
    %cst_15 = arith.constant 5.000000e-01 : f32
    %40 = vector.broadcast %cst_15 : f32 to vector<2x128xf32>
    %41 = arith.mulf %40, %39 : vector<2x128xf32>
    %42 = arith.select %11, %41, %39 : vector<2x128xi1>, vector<2x128xf32>
    %43 = math.tanh %42 : vector<2x128xf32>
    %cst_16 = arith.constant 1.000000e+00 : f32
    %44 = vector.broadcast %cst_16 : f32 to vector<2x128xf32>
    %45 = arith.addf %43, %44 : vector<2x128xf32>
    %cst_17 = arith.constant 5.000000e-01 : f32
    %46 = vector.broadcast %cst_17 : f32 to vector<2x128xf32>
    %47 = arith.mulf %46, %45 : vector<2x128xf32>
    %48 = arith.select %11, %47, %43 : vector<2x128xi1>, vector<2x128xf32>
    %49 = vector.extract_strided_slice %48 {offsets = [0, 0], sizes = [2, 32], strides = [1, 1]} : vector<2x128xf32> to vector<2x32xf32>
    %50 = vector.extract_strided_slice %48 {offsets = [0, 32], sizes = [2, 32], strides = [1, 1]} : vector<2x128xf32> to vector<2x32xf32>
    %51 = vector.extract_strided_slice %48 {offsets = [0, 64], sizes = [2, 32], strides = [1, 1]} : vector<2x128xf32> to vector<2x32xf32>
    %52 = vector.extract_strided_slice %48 {offsets = [0, 96], sizes = [2, 32], strides = [1, 1]} : vector<2x128xf32> to vector<2x32xf32>
    %53 = arith.mulf %50, %33 : vector<2x32xf32>
    %54 = arith.mulf %49, %52 : vector<2x32xf32>
    %55 = arith.addf %53, %54 : vector<2x32xf32>
    %56 = math.tanh %55 : vector<2x32xf32>
    %57 = arith.mulf %51, %56 : vector<2x32xf32>
    %58 = vector.extract_strided_slice %8 {offsets = [4, 0], sizes = [2, 128], strides = [1, 1]} : vector<16x128xf32> to vector<2x128xf32>
    %59 = arith.truncf %57 : vector<2x32xf32> to vector<2x32xbf16>
    %cst_18 = arith.constant dense<0.000000e+00> : vector<2x128xf32>
    %60 = tpu.matmul %59, %0, %cst_18 {dimension_numbers = #tpu.dot_dimension_numbers<[1], [0], [0], [1], [0, 0, 1, 1], [], []>} : vector<2x32xbf16>, vector<32x128xbf16>, vector<2x128xf32> -> vector<2x128xf32>
    %61 = arith.addf %58, %60 : vector<2x128xf32>
    %cst_19 = arith.constant 5.000000e-01 : f32
    %62 = vector.broadcast %cst_19 : f32 to vector<2x128xf32>
    %63 = arith.mulf %62, %61 : vector<2x128xf32>
    %64 = arith.select %11, %63, %61 : vector<2x128xi1>, vector<2x128xf32>
    %65 = math.tanh %64 : vector<2x128xf32>
    %cst_20 = arith.constant 1.000000e+00 : f32
    %66 = vector.broadcast %cst_20 : f32 to vector<2x128xf32>
    %67 = arith.addf %65, %66 : vector<2x128xf32>
    %cst_21 = arith.constant 5.000000e-01 : f32
    %68 = vector.broadcast %cst_21 : f32 to vector<2x128xf32>
    %69 = arith.mulf %68, %67 : vector<2x128xf32>
    %70 = arith.select %11, %69, %65 : vector<2x128xi1>, vector<2x128xf32>
    %71 = vector.extract_strided_slice %70 {offsets = [0, 0], sizes = [2, 32], strides = [1, 1]} : vector<2x128xf32> to vector<2x32xf32>
    %72 = vector.extract_strided_slice %70 {offsets = [0, 32], sizes = [2, 32], strides = [1, 1]} : vector<2x128xf32> to vector<2x32xf32>
    %73 = vector.extract_strided_slice %70 {offsets = [0, 64], sizes = [2, 32], strides = [1, 1]} : vector<2x128xf32> to vector<2x32xf32>
    %74 = vector.extract_strided_slice %70 {offsets = [0, 96], sizes = [2, 32], strides = [1, 1]} : vector<2x128xf32> to vector<2x32xf32>
    %75 = arith.mulf %72, %55 : vector<2x32xf32>
    %76 = arith.mulf %71, %74 : vector<2x32xf32>
    %77 = arith.addf %75, %76 : vector<2x32xf32>
    %78 = math.tanh %77 : vector<2x32xf32>
    %79 = arith.mulf %73, %78 : vector<2x32xf32>
    %80 = vector.extract_strided_slice %8 {offsets = [6, 0], sizes = [2, 128], strides = [1, 1]} : vector<16x128xf32> to vector<2x128xf32>
    %81 = arith.truncf %79 : vector<2x32xf32> to vector<2x32xbf16>
    %cst_22 = arith.constant dense<0.000000e+00> : vector<2x128xf32>
    %82 = tpu.matmul %81, %0, %cst_22 {dimension_numbers = #tpu.dot_dimension_numbers<[1], [0], [0], [1], [0, 0, 1, 1], [], []>} : vector<2x32xbf16>, vector<32x128xbf16>, vector<2x128xf32> -> vector<2x128xf32>
    %83 = arith.addf %80, %82 : vector<2x128xf32>
    %cst_23 = arith.constant 5.000000e-01 : f32
    %84 = vector.broadcast %cst_23 : f32 to vector<2x128xf32>
    %85 = arith.mulf %84, %83 : vector<2x128xf32>
    %86 = arith.select %11, %85, %83 : vector<2x128xi1>, vector<2x128xf32>
    %87 = math.tanh %86 : vector<2x128xf32>
    %cst_24 = arith.constant 1.000000e+00 : f32
    %88 = vector.broadcast %cst_24 : f32 to vector<2x128xf32>
    %89 = arith.addf %87, %88 : vector<2x128xf32>
    %cst_25 = arith.constant 5.000000e-01 : f32
    %90 = vector.broadcast %cst_25 : f32 to vector<2x128xf32>
    %91 = arith.mulf %90, %89 : vector<2x128xf32>
    %92 = arith.select %11, %91, %87 : vector<2x128xi1>, vector<2x128xf32>
    %93 = vector.extract_strided_slice %92 {offsets = [0, 0], sizes = [2, 32], strides = [1, 1]} : vector<2x128xf32> to vector<2x32xf32>
    %94 = vector.extract_strided_slice %92 {offsets = [0, 32], sizes = [2, 32], strides = [1, 1]} : vector<2x128xf32> to vector<2x32xf32>
    %95 = vector.extract_strided_slice %92 {offsets = [0, 64], sizes = [2, 32], strides = [1, 1]} : vector<2x128xf32> to vector<2x32xf32>
    %96 = vector.extract_strided_slice %92 {offsets = [0, 96], sizes = [2, 32], strides = [1, 1]} : vector<2x128xf32> to vector<2x32xf32>
    %97 = arith.mulf %94, %77 : vector<2x32xf32>
    %98 = arith.mulf %93, %96 : vector<2x32xf32>
    %99 = arith.addf %97, %98 : vector<2x32xf32>
    %100 = math.tanh %99 : vector<2x32xf32>
    %101 = arith.mulf %95, %100 : vector<2x32xf32>
    %102 = vector.extract_strided_slice %8 {offsets = [8, 0], sizes = [2, 128], strides = [1, 1]} : vector<16x128xf32> to vector<2x128xf32>
    %103 = arith.truncf %101 : vector<2x32xf32> to vector<2x32xbf16>
    %cst_26 = arith.constant dense<0.000000e+00> : vector<2x128xf32>
    %104 = tpu.matmul %103, %0, %cst_26 {dimension_numbers = #tpu.dot_dimension_numbers<[1], [0], [0], [1], [0, 0, 1, 1], [], []>} : vector<2x32xbf16>, vector<32x128xbf16>, vector<2x128xf32> -> vector<2x128xf32>
    %105 = arith.addf %102, %104 : vector<2x128xf32>
    %cst_27 = arith.constant 5.000000e-01 : f32
    %106 = vector.broadcast %cst_27 : f32 to vector<2x128xf32>
    %107 = arith.mulf %106, %105 : vector<2x128xf32>
    %108 = arith.select %11, %107, %105 : vector<2x128xi1>, vector<2x128xf32>
    %109 = math.tanh %108 : vector<2x128xf32>
    %cst_28 = arith.constant 1.000000e+00 : f32
    %110 = vector.broadcast %cst_28 : f32 to vector<2x128xf32>
    %111 = arith.addf %109, %110 : vector<2x128xf32>
    %cst_29 = arith.constant 5.000000e-01 : f32
    %112 = vector.broadcast %cst_29 : f32 to vector<2x128xf32>
    %113 = arith.mulf %112, %111 : vector<2x128xf32>
    %114 = arith.select %11, %113, %109 : vector<2x128xi1>, vector<2x128xf32>
    %115 = vector.extract_strided_slice %114 {offsets = [0, 0], sizes = [2, 32], strides = [1, 1]} : vector<2x128xf32> to vector<2x32xf32>
    %116 = vector.extract_strided_slice %114 {offsets = [0, 32], sizes = [2, 32], strides = [1, 1]} : vector<2x128xf32> to vector<2x32xf32>
    %117 = vector.extract_strided_slice %114 {offsets = [0, 64], sizes = [2, 32], strides = [1, 1]} : vector<2x128xf32> to vector<2x32xf32>
    %118 = vector.extract_strided_slice %114 {offsets = [0, 96], sizes = [2, 32], strides = [1, 1]} : vector<2x128xf32> to vector<2x32xf32>
    %119 = arith.mulf %116, %99 : vector<2x32xf32>
    %120 = arith.mulf %115, %118 : vector<2x32xf32>
    %121 = arith.addf %119, %120 : vector<2x32xf32>
    %122 = math.tanh %121 : vector<2x32xf32>
    %123 = arith.mulf %117, %122 : vector<2x32xf32>
    %124 = vector.extract_strided_slice %8 {offsets = [10, 0], sizes = [2, 128], strides = [1, 1]} : vector<16x128xf32> to vector<2x128xf32>
    %125 = arith.truncf %123 : vector<2x32xf32> to vector<2x32xbf16>
    %cst_30 = arith.constant dense<0.000000e+00> : vector<2x128xf32>
    %126 = tpu.matmul %125, %0, %cst_30 {dimension_numbers = #tpu.dot_dimension_numbers<[1], [0], [0], [1], [0, 0, 1, 1], [], []>} : vector<2x32xbf16>, vector<32x128xbf16>, vector<2x128xf32> -> vector<2x128xf32>
    %127 = arith.addf %124, %126 : vector<2x128xf32>
    %cst_31 = arith.constant 5.000000e-01 : f32
    %128 = vector.broadcast %cst_31 : f32 to vector<2x128xf32>
    %129 = arith.mulf %128, %127 : vector<2x128xf32>
    %130 = arith.select %11, %129, %127 : vector<2x128xi1>, vector<2x128xf32>
    %131 = math.tanh %130 : vector<2x128xf32>
    %cst_32 = arith.constant 1.000000e+00 : f32
    %132 = vector.broadcast %cst_32 : f32 to vector<2x128xf32>
    %133 = arith.addf %131, %132 : vector<2x128xf32>
    %cst_33 = arith.constant 5.000000e-01 : f32
    %134 = vector.broadcast %cst_33 : f32 to vector<2x128xf32>
    %135 = arith.mulf %134, %133 : vector<2x128xf32>
    %136 = arith.select %11, %135, %131 : vector<2x128xi1>, vector<2x128xf32>
    %137 = vector.extract_strided_slice %136 {offsets = [0, 0], sizes = [2, 32], strides = [1, 1]} : vector<2x128xf32> to vector<2x32xf32>
    %138 = vector.extract_strided_slice %136 {offsets = [0, 32], sizes = [2, 32], strides = [1, 1]} : vector<2x128xf32> to vector<2x32xf32>
    %139 = vector.extract_strided_slice %136 {offsets = [0, 64], sizes = [2, 32], strides = [1, 1]} : vector<2x128xf32> to vector<2x32xf32>
    %140 = vector.extract_strided_slice %136 {offsets = [0, 96], sizes = [2, 32], strides = [1, 1]} : vector<2x128xf32> to vector<2x32xf32>
    %141 = arith.mulf %138, %121 : vector<2x32xf32>
    %142 = arith.mulf %137, %140 : vector<2x32xf32>
    %143 = arith.addf %141, %142 : vector<2x32xf32>
    %144 = math.tanh %143 : vector<2x32xf32>
    %145 = arith.mulf %139, %144 : vector<2x32xf32>
    %146 = vector.extract_strided_slice %8 {offsets = [12, 0], sizes = [2, 128], strides = [1, 1]} : vector<16x128xf32> to vector<2x128xf32>
    %147 = arith.truncf %145 : vector<2x32xf32> to vector<2x32xbf16>
    %cst_34 = arith.constant dense<0.000000e+00> : vector<2x128xf32>
    %148 = tpu.matmul %147, %0, %cst_34 {dimension_numbers = #tpu.dot_dimension_numbers<[1], [0], [0], [1], [0, 0, 1, 1], [], []>} : vector<2x32xbf16>, vector<32x128xbf16>, vector<2x128xf32> -> vector<2x128xf32>
    %149 = arith.addf %146, %148 : vector<2x128xf32>
    %cst_35 = arith.constant 5.000000e-01 : f32
    %150 = vector.broadcast %cst_35 : f32 to vector<2x128xf32>
    %151 = arith.mulf %150, %149 : vector<2x128xf32>
    %152 = arith.select %11, %151, %149 : vector<2x128xi1>, vector<2x128xf32>
    %153 = math.tanh %152 : vector<2x128xf32>
    %cst_36 = arith.constant 1.000000e+00 : f32
    %154 = vector.broadcast %cst_36 : f32 to vector<2x128xf32>
    %155 = arith.addf %153, %154 : vector<2x128xf32>
    %cst_37 = arith.constant 5.000000e-01 : f32
    %156 = vector.broadcast %cst_37 : f32 to vector<2x128xf32>
    %157 = arith.mulf %156, %155 : vector<2x128xf32>
    %158 = arith.select %11, %157, %153 : vector<2x128xi1>, vector<2x128xf32>
    %159 = vector.extract_strided_slice %158 {offsets = [0, 0], sizes = [2, 32], strides = [1, 1]} : vector<2x128xf32> to vector<2x32xf32>
    %160 = vector.extract_strided_slice %158 {offsets = [0, 32], sizes = [2, 32], strides = [1, 1]} : vector<2x128xf32> to vector<2x32xf32>
    %161 = vector.extract_strided_slice %158 {offsets = [0, 64], sizes = [2, 32], strides = [1, 1]} : vector<2x128xf32> to vector<2x32xf32>
    %162 = vector.extract_strided_slice %158 {offsets = [0, 96], sizes = [2, 32], strides = [1, 1]} : vector<2x128xf32> to vector<2x32xf32>
    %163 = arith.mulf %160, %143 : vector<2x32xf32>
    %164 = arith.mulf %159, %162 : vector<2x32xf32>
    %165 = arith.addf %163, %164 : vector<2x32xf32>
    %166 = math.tanh %165 : vector<2x32xf32>
    %167 = arith.mulf %161, %166 : vector<2x32xf32>
    %168 = vector.extract_strided_slice %8 {offsets = [14, 0], sizes = [2, 128], strides = [1, 1]} : vector<16x128xf32> to vector<2x128xf32>
    %169 = arith.truncf %167 : vector<2x32xf32> to vector<2x32xbf16>
    %cst_38 = arith.constant dense<0.000000e+00> : vector<2x128xf32>
    %170 = tpu.matmul %169, %0, %cst_38 {dimension_numbers = #tpu.dot_dimension_numbers<[1], [0], [0], [1], [0, 0, 1, 1], [], []>} : vector<2x32xbf16>, vector<32x128xbf16>, vector<2x128xf32> -> vector<2x128xf32>
    %171 = arith.addf %168, %170 : vector<2x128xf32>
    %cst_39 = arith.constant 5.000000e-01 : f32
    %172 = vector.broadcast %cst_39 : f32 to vector<2x128xf32>
    %173 = arith.mulf %172, %171 : vector<2x128xf32>
    %174 = arith.select %11, %173, %171 : vector<2x128xi1>, vector<2x128xf32>
    %175 = math.tanh %174 : vector<2x128xf32>
    %cst_40 = arith.constant 1.000000e+00 : f32
    %176 = vector.broadcast %cst_40 : f32 to vector<2x128xf32>
    %177 = arith.addf %175, %176 : vector<2x128xf32>
    %cst_41 = arith.constant 5.000000e-01 : f32
    %178 = vector.broadcast %cst_41 : f32 to vector<2x128xf32>
    %179 = arith.mulf %178, %177 : vector<2x128xf32>
    %180 = arith.select %11, %179, %175 : vector<2x128xi1>, vector<2x128xf32>
    %181 = vector.extract_strided_slice %180 {offsets = [0, 0], sizes = [2, 32], strides = [1, 1]} : vector<2x128xf32> to vector<2x32xf32>
    %182 = vector.extract_strided_slice %180 {offsets = [0, 32], sizes = [2, 32], strides = [1, 1]} : vector<2x128xf32> to vector<2x32xf32>
    %183 = vector.extract_strided_slice %180 {offsets = [0, 64], sizes = [2, 32], strides = [1, 1]} : vector<2x128xf32> to vector<2x32xf32>
    %184 = vector.extract_strided_slice %180 {offsets = [0, 96], sizes = [2, 32], strides = [1, 1]} : vector<2x128xf32> to vector<2x32xf32>
    %185 = arith.mulf %182, %165 : vector<2x32xf32>
    %186 = arith.mulf %181, %184 : vector<2x32xf32>
    %187 = arith.addf %185, %186 : vector<2x32xf32>
    %188 = math.tanh %187 : vector<2x32xf32>
    %189 = arith.mulf %183, %188 : vector<2x32xf32>
    %c0_42 = arith.constant 0 : index
    %c0_43 = arith.constant 0 : index
    %190 = vector.load %arg5[%c0_42, %c0_43] : memref<1x32xf32, #tpu.memory_space<vmem>>, vector<1x32xf32>
    %191 = vector.broadcast %190 : vector<1x32xf32> to vector<2x32xf32>
    %192 = arith.mulf %189, %191 : vector<2x32xf32>
    %cst_44 = arith.constant dense<0.000000e+00> : vector<2xf32>
    %193 = vector.multi_reduction <add>, %192, %cst_44 [1] : vector<2x32xf32> to vector<2xf32>
    %194 = vector.shape_cast %193 : vector<2xf32> to vector<2x1xf32>
    %c0_45 = arith.constant 0 : index
    %c0_46 = arith.constant 0 : index
    %195 = vector.load %arg6[%c0_45, %c0_46] : memref<1x1xf32, #tpu.memory_space<vmem>>, vector<1x1xf32>
    %196 = vector.broadcast %195 : vector<1x1xf32> to vector<2x1xf32>
    %197 = arith.addf %194, %196 : vector<2x1xf32>
    %198 = vector.shape_cast %197 : vector<2x1xf32> to vector<2x1xf32>
    %199 = vector.broadcast %198 : vector<2x1xf32> to vector<2x128xf32>
    %c0_47 = arith.constant 0 : index
    %c0_48 = arith.constant 0 : index
    %200 = vector.load %arg7[%c0_47, %c0_48] : memref<2x128xf32, #tpu.memory_space<vmem>>, vector<2x128xf32>
    tpu.vector_store %arg7[%c0_47, %c0_48], %199 {strides = array<i32>} : memref<2x128xf32, #tpu.memory_space<vmem>>, vector<2x128xf32>,
    return
  }
  func.func @transform_0(%arg0: i32) -> (i32, i32, i32) {
    %c0_i32 = arith.constant 0 : i32
    %c0_i32_0 = arith.constant 0 : i32
    %c0_i32_1 = arith.constant 0 : i32
    return %arg0, %c0_i32, %c0_i32_0 : i32, i32, i32
  }
  func.func @transform_1(%arg0: i32) -> (i32, i32) {
    %c0_i32 = arith.constant 0 : i32
    %c0_i32_0 = arith.constant 0 : i32
    %c0_i32_1 = arith.constant 0 : i32
    return %c0_i32, %c0_i32_0 : i32, i32
  }
  func.func @transform_2(%arg0: i32) -> (i32, i32) {
    %c0_i32 = arith.constant 0 : i32
    %c0_i32_0 = arith.constant 0 : i32
    %c0_i32_1 = arith.constant 0 : i32
    return %c0_i32, %c0_i32_0 : i32, i32
  }
  func.func @transform_3(%arg0: i32) -> (i32, i32) {
    %c0_i32 = arith.constant 0 : i32
    %c0_i32_0 = arith.constant 0 : i32
    %c0_i32_1 = arith.constant 0 : i32
    return %c0_i32, %c0_i32_0 : i32, i32
  }
  func.func @transform_4(%arg0: i32) -> (i32, i32) {
    %c0_i32 = arith.constant 0 : i32
    %c0_i32_0 = arith.constant 0 : i32
    %c0_i32_1 = arith.constant 0 : i32
    return %c0_i32, %c0_i32_0 : i32, i32
  }
  func.func @transform_5(%arg0: i32) -> (i32, i32) {
    %c0_i32 = arith.constant 0 : i32
    %c0_i32_0 = arith.constant 0 : i32
    %c0_i32_1 = arith.constant 0 : i32
    return %c0_i32, %c0_i32_0 : i32, i32
  }
  func.func @transform_6(%arg0: i32) -> (i32, i32) {
    %c0_i32 = arith.constant 0 : i32
    %c0_i32_0 = arith.constant 0 : i32
    return %arg0, %c0_i32 : i32, i32
  }
}

</mosaic_0001>

<llo_original>
// kernel: tpu_custom_call.1
$region0: #{tpu_custom_call.1}
  #allocation0 [shape = 'u32[]', space=smem, size = 0x4, offset = 0x4, fixed_abs, tag = 'smem constant byte address 0x4 - core index']
  #allocation1 [shape = 'u32[72,128]{1,0:T(1,128)}', space=vmem, size = 0x9000, scoped, tag = 'internal scratch']
  #allocation2 [shape = 'f32[1,1]{1,0:T(1,128)S(1)}', space=vmem, size = 0x200, scoped, tag = 'scoped memory for tpu_custom_call.1']
  %s0 = inlined_call_operand.vmem [shape: f32[1,16,4], index: 0, kind: input, shape index: {}]
  %s1 = inlined_call_operand.vmem [shape: bf16[4,128], index: 1, kind: input, shape index: {}]
  %s2 = inlined_call_operand.vmem [shape: bf16[32,128], index: 2, kind: input, shape index: {}]
  %s3 = inlined_call_operand.vmem [shape: f32[1,128], index: 3, kind: input, shape index: {}]
  %s4 = inlined_call_operand.vmem [shape: f32[1,32], index: 4, kind: input, shape index: {}]
  %s5 = inlined_call_operand.<no memory space> [shape: f32[1,1], index: 5, kind: input, shape index: {}]
  %s6 = inlined_call_operand.hbm [shape: f32[2,128], index: 6, kind: output, shape index: {}]
  %s7 = sld [smem:[#allocation0]]
  $region34: #{tpu_custom_call.1} parent=0
    _
  %s9 = ssub.s32 1, %s7
  %s10 = scalar_select 0, %s9, %s7
  %v11 = vstv %s5
  %12 = vst [vmem:[#allocation2] sm:$0x1] %v11
  $region1: #{tpu_custom_call.1} parent=0
    #allocation3 [shape = 'u8[1024]{0}', space=vmem, size = 0x400, scoped, tag = 'output window, operand 0, single buffered']
    #allocation4 [shape = 's32[1]{0}', space=sflag, size = 0x4, scoped, tag = 'scoped memory for tpu_custom_call.1']
    %13 = vsyncpa [#allocation4], 0
    // Predicated region
    $region2: #{tpu_custom_call.1} parent=1 // pred_check
      _
    $region3: #{tpu_custom_call.1} parent=1 // pred_check_branch
      %15 = sbr.rel (0) target = $region5
    $region4: #{tpu_custom_call.1} parent=1 // pred_region
      _
    $region5: #{tpu_custom_call.1} parent=1 // pred_fallthru
      _
    // Predicated region
    $region6: #{tpu_custom_call.1} parent=1 // pred_check
      _
    $region7: #{tpu_custom_call.1} parent=1 // pred_check_branch
      %17 = sbr.rel (0) target = $region9
    $region8: #{tpu_custom_call.1} parent=1 // pred_region
      _
    $region9: #{tpu_custom_call.1} parent=1 // pred_fallthru
      _
    // Predicated region
    $region10: #{tpu_custom_call.1} parent=1 // pred_check
      _
    $region11: #{tpu_custom_call.1} parent=1 // pred_check_branch
      %19 = sbr.rel (0) target = $region13
    $region12: #{tpu_custom_call.1} parent=1 // pred_region
      _
    $region13: #{tpu_custom_call.1} parent=1 // pred_fallthru
      _
    // Predicated region
    $region14: #{tpu_custom_call.1} parent=1 // pred_check
      _
    $region15: #{tpu_custom_call.1} parent=1 // pred_check_branch
      %21 = sbr.rel (0) target = $region17
    $region16: #{tpu_custom_call.1} parent=1 // pred_region
      _
    $region17: #{tpu_custom_call.1} parent=1 // pred_fallthru
      _
    // Predicated region
    $region18: #{tpu_custom_call.1} parent=1 // pred_check
      _
    $region19: #{tpu_custom_call.1} parent=1 // pred_check_branch
      %23 = sbr.rel (0) target = $region21
    $region20: #{tpu_custom_call.1} parent=1 // pred_region
      _
    $region21: #{tpu_custom_call.1} parent=1 // pred_fallthru
      _
    // Predicated region
    $region22: #{tpu_custom_call.1} parent=1 // pred_check
      _
    $region23: #{tpu_custom_call.1} parent=1 // pred_check_branch
      %25 = sbr.rel (0) target = $region25
    $region24: #{tpu_custom_call.1} parent=1 // pred_region
      _
    $region25: #{tpu_custom_call.1} parent=1 // pred_fallthru
      _
    %v27 = vld [vmem:[%s2] sm:$0xf]
    %v28 = vld [vmem:[%s2 + $0x4] sm:$0xf]
    %v29 = vld [vmem:[%s2 + $0x8] sm:$0xf]
    %v30 = vld [vmem:[%s2 + $0xc] sm:$0xf]
    %v31 = vld [vmem:[%s0] sm:$0xff]
    %v32 = vld [vmem:[%s0 + $0x8] sm:$0xff]
    %v33 = vpack.c.bf16 %v32, %v31
    %v34 = vld [vmem:[%s1] sm:$0x3]
    %v35 = vld [vmem:[%s3] sm:$0x1]
    %v37 = vperm.slane %v35, 0
    %vm39 = vcmask 31744
    %v41 = vsel %vm39, %v33, 0
    %vm43 = vcmask 1041408
    %v45 = vsel %vm43, %v34, 0
    %47 = vmatpush.bf16.msra.mxu0 0
    %48 = vmatpush.bf16.msra.mxu0 0
    %49 = vmatpush.bf16.msra.mxu0 0
    %50 = vmatpush.bf16.msra.mxu0 0
    %51 = vmatpush.bf16.msra.mxu0 0
    %52 = vmatpush.bf16.msra.mxu0 0
    %53 = vmatpush.bf16.msra.mxu0 0
    %54 = vmatpush.bf16.msra.mxu0 %v45
    %55 = vmatmul.bf16.gmra.mxu0 %v41
    %v56 = vpop.f32.mrf.mxu0
    %v57 = vadd.f32 %v37, %v56
    %v58 = vpop.f32.mrf.mxu0
    %v59 = vadd.f32 %v37, %v58
    %60 = vdwg.mxu0
    %v61 = vlaneseq
    %v62 = vand.u32 %v61, 127
    %vm63 = vcmp.lt.s32.totalorder %v62, 96
    %v68 = vunpack.c.l.b16 %v27
    %v69 = vunpack.c.l.b16 %v28
    %v70 = vunpack.c.l.b16 %v29
    %v71 = vunpack.c.l.b16 %v30
    %v72 = vpack.c.b16 %v69, %v68
    %v73 = vpack.c.b16 %v71, %v70
    %vm76 = vcmask 261120
    %v78 = vsel %vm76, 0, 0
    %80 = vmatpush.bf16.msra.mxu0 0
    %81 = vmatpush.bf16.msra.mxu0 0
    %82 = vmatpush.bf16.msra.mxu0 0
    %83 = vmatpush.bf16.msra.mxu0 0
    %84 = vmatpush.bf16.msra.mxu0 0
    %85 = vmatpush.bf16.msra.mxu0 0
    %86 = vmatpush.bf16.msra.mxu0 %v73
    %87 = vmatpush.bf16.msra.mxu0 %v72
    %88 = vmatmul.bf16.gmra.mxu0 %v78
    %v89 = vpop.f32.mrf.mxu0
    %v90 = vadd.f32 0.0, %v89
    %v91 = vpop.f32.mrf.mxu0
    %92 = vdwg.mxu0
    %v93 = vadd.f32 %v57, %v90
    %v94 = vmul.f32 %v93, 0.5
    %v95 = vsel %vm63, %v94, %v93
    %v96 = vtanh.pop %v95
    %v97 = vadd.f32 %v96, 1.0
    %v98 = vmul.f32 %v97, 0.5
    %v99 = vsel %vm63, %v98, %v96
    %v100 = vmul.f32 %v99, 0.0
    %102 = vrot.lane.b32.xlu0 %v99, 32
    %v103 = vpop.permute.xlu0 %102
    %v105 = vmul.f32 %v99, %v103
    %107 = vrot.lane.b32.xlu0 %v105, 32
    %v108 = vpop.permute.xlu0 %107
    %v110 = vadd.f32 %v100, %v108
    %v111 = vtanh.pop %v110
    %113 = vrot.lane.b32.xlu0 %v111, 32
    %v114 = vpop.permute.xlu0 %113
    %v116 = vmul.f32 %v99, %v114
    %v117 = vpack.c.bf16 %v116, %v116
    %119 = vrot.lane.b32.xlu0 %v117, 64
    %v120 = vpop.permute.xlu0 %119
    %v122 = vsel %vm76, %v120, 0
    %124 = vmatpush.bf16.msra.mxu0 0
    %125 = vmatpush.bf16.msra.mxu0 0
    %126 = vmatpush.bf16.msra.mxu0 0
    %127 = vmatpush.bf16.msra.mxu0 0
    %128 = vmatpush.bf16.msra.mxu0 0
    %129 = vmatpush.bf16.msra.mxu0 0
    %130 = vmatpush.bf16.msra.mxu0 %v73
    %131 = vmatpush.bf16.msra.mxu0 %v72
    %132 = vmatmul.bf16.gmra.mxu0 %v122
    %v133 = vpop.f32.mrf.mxu0
    %v134 = vadd.f32 0.0, %v133
    %v135 = vpop.f32.mrf.mxu0
    %136 = vdwg.mxu0
    %v138 = vrot.slane %v134, 6
    %v140 = vadd.f32 %v57, %v138
    %v141 = vmul.f32 %v140, 0.5
    %v142 = vsel %vm63, %v141, %v140
    %v143 = vtanh.pop %v142
    %v144 = vadd.f32 %v143, 1.0
    %v145 = vmul.f32 %v144, 0.5
    %v146 = vsel %vm63, %v145, %v143
    %v148 = vrot.slane %v110, 6
    %v150 = vmul.f32 %v146, %v148
    %152 = vrot.lane.b32.xlu0 %v146, 32
    %v153 = vpop.permute.xlu0 %152
    %v155 = vmul.f32 %v146, %v153
    %157 = vrot.lane.b32.xlu0 %v155, 32
    %v158 = vpop.permute.xlu0 %157
    %v160 = vadd.f32 %v150, %v158
    %v161 = vtanh.pop %v160
    %163 = vrot.lane.b32.xlu0 %v161, 32
    %v164 = vpop.permute.xlu0 %163
    %v166 = vmul.f32 %v146, %v164
    %v167 = vpack.c.bf16 %v166, %v166
    %v169 = vrot.slane %v167, 1
    %170 = vrot.lane.b32.xlu0 %v169, 64
    %v171 = vpop.permute.xlu0 %170
    %v173 = vsel %vm76, %v171, 0
    %175 = vmatpush.bf16.msra.mxu0 0
    %176 = vmatpush.bf16.msra.mxu0 0
    %177 = vmatpush.bf16.msra.mxu0 0
    %178 = vmatpush.bf16.msra.mxu0 0
    %179 = vmatpush.bf16.msra.mxu0 0
    %180 = vmatpush.bf16.msra.mxu0 0
    %181 = vmatpush.bf16.msra.mxu0 %v73
    %182 = vmatpush.bf16.msra.mxu0 %v72
    %183 = vmatmul.bf16.gmra.mxu0 %v173
    %v184 = vpop.f32.mrf.mxu0
    %v185 = vadd.f32 0.0, %v184
    %v186 = vpop.f32.mrf.mxu0
    %187 = vdwg.mxu0
    %v189 = vrot.slane %v185, 4
    %v191 = vadd.f32 %v57, %v189
    %v192 = vmul.f32 %v191, 0.5
    %v193 = vsel %vm63, %v192, %v191
    %v194 = vtanh.pop %v193
    %v195 = vadd.f32 %v194, 1.0
    %v196 = vmul.f32 %v195, 0.5
    %v197 = vsel %vm63, %v196, %v194
    %v199 = vrot.slane %v160, 6
    %v201 = vmul.f32 %v197, %v199
    %203 = vrot.lane.b32.xlu0 %v197, 32
    %v204 = vpop.permute.xlu0 %203
    %v206 = vmul.f32 %v197, %v204
    %208 = vrot.lane.b32.xlu0 %v206, 32
    %v209 = vpop.permute.xlu0 %208
    %v211 = vadd.f32 %v201, %v209
    %v212 = vtanh.pop %v211
    %214 = vrot.lane.b32.xlu0 %v212, 32
    %v215 = vpop.permute.xlu0 %214
    %v217 = vmul.f32 %v197, %v215
    %v218 = vpack.c.bf16 %v217, %v217
    %v220 = vrot.slane %v218, 2
    %221 = vrot.lane.b32.xlu0 %v220, 64
    %v222 = vpop.permute.xlu0 %221
    %v224 = vsel %vm76, %v222, 0
    %226 = vmatpush.bf16.msra.mxu0 0
    %227 = vmatpush.bf16.msra.mxu0 0
    %228 = vmatpush.bf16.msra.mxu0 0
    %229 = vmatpush.bf16.msra.mxu0 0
    %230 = vmatpush.bf16.msra.mxu0 0
    %231 = vmatpush.bf16.msra.mxu0 0
    %232 = vmatpush.bf16.msra.mxu0 %v73
    %233 = vmatpush.bf16.msra.mxu0 %v72
    %234 = vmatmul.bf16.gmra.mxu0 %v224
    %v235 = vpop.f32.mrf.mxu0
    %v236 = vadd.f32 0.0, %v235
    %v237 = vpop.f32.mrf.mxu0
    %238 = vdwg.mxu0
    %v240 = vrot.slane %v236, 2
    %v242 = vadd.f32 %v57, %v240
    %v243 = vmul.f32 %v242, 0.5
    %v244 = vsel %vm63, %v243, %v242
    %v245 = vtanh.pop %v244
    %v246 = vadd.f32 %v245, 1.0
    %v247 = vmul.f32 %v246, 0.5
    %v248 = vsel %vm63, %v247, %v245
    %v250 = vrot.slane %v211, 6
    %v252 = vmul.f32 %v248, %v250
    %254 = vrot.lane.b32.xlu0 %v248, 32
    %v255 = vpop.permute.xlu0 %254
    %v257 = vmul.f32 %v248, %v255
    %259 = vrot.lane.b32.xlu0 %v257, 32
    %v260 = vpop.permute.xlu0 %259
    %v262 = vadd.f32 %v252, %v260
    %v263 = vtanh.pop %v262
    %265 = vrot.lane.b32.xlu0 %v263, 32
    %v266 = vpop.permute.xlu0 %265
    %v268 = vmul.f32 %v248, %v266
    %v269 = vpack.c.bf16 %v268, %v268
    %v271 = vrot.slane %v269, 3
    %272 = vrot.lane.b32.xlu0 %v271, 64
    %v273 = vpop.permute.xlu0 %272
    %v275 = vsel %vm76, %v273, 0
    %277 = vmatpush.bf16.msra.mxu0 0
    %278 = vmatpush.bf16.msra.mxu0 0
    %279 = vmatpush.bf16.msra.mxu0 0
    %280 = vmatpush.bf16.msra.mxu0 0
    %281 = vmatpush.bf16.msra.mxu0 0
    %282 = vmatpush.bf16.msra.mxu0 0
    %283 = vmatpush.bf16.msra.mxu0 %v73
    %284 = vmatpush.bf16.msra.mxu0 %v72
    %285 = vmatmul.bf16.gmra.mxu0 %v275
    %v286 = vpop.f32.mrf.mxu0
    %v287 = vadd.f32 0.0, %v286
    %v288 = vpop.f32.mrf.mxu0
    %289 = vdwg.mxu0
    %v290 = vadd.f32 %v59, %v287
    %v291 = vmul.f32 %v290, 0.5
    %v292 = vsel %vm63, %v291, %v290
    %v293 = vtanh.pop %v292
    %v294 = vadd.f32 %v293, 1.0
    %v295 = vmul.f32 %v294, 0.5
    %v296 = vsel %vm63, %v295, %v293
    %v298 = vrot.slane %v262, 6
    %v300 = vmul.f32 %v296, %v298
    %302 = vrot.lane.b32.xlu0 %v296, 32
    %v303 = vpop.permute.xlu0 %302
    %v305 = vmul.f32 %v296, %v303
    %307 = vrot.lane.b32.xlu0 %v305, 32
    %v308 = vpop.permute.xlu0 %307
    %v310 = vadd.f32 %v300, %v308
    %v311 = vtanh.pop %v310
    %313 = vrot.lane.b32.xlu0 %v311, 32
    %v314 = vpop.permute.xlu0 %313
    %v316 = vmul.f32 %v296, %v314
    %v317 = vpack.c.bf16 %v316, %v316
    %319 = vrot.lane.b32.xlu0 %v317, 64
    %v320 = vpop.permute.xlu0 %319
    %v322 = vsel %vm76, %v320, 0
    %324 = vmatpush.bf16.msra.mxu0 0
    %325 = vmatpush.bf16.msra.mxu0 0
    %326 = vmatpush.bf16.msra.mxu0 0
    %327 = vmatpush.bf16.msra.mxu0 0
    %328 = vmatpush.bf16.msra.mxu0 0
    %329 = vmatpush.bf16.msra.mxu0 0
    %330 = vmatpush.bf16.msra.mxu0 %v73
    %331 = vmatpush.bf16.msra.mxu0 %v72
    %332 = vmatmul.bf16.gmra.mxu0 %v322
    %v333 = vpop.f32.mrf.mxu0
    %v334 = vadd.f32 0.0, %v333
    %v335 = vpop.f32.mrf.mxu0
    %336 = vdwg.mxu0
    %v338 = vrot.slane %v334, 6
    %v340 = vadd.f32 %v59, %v338
    %v341 = vmul.f32 %v340, 0.5
    %v342 = vsel %vm63, %v341, %v340
    %v343 = vtanh.pop %v342
    %v344 = vadd.f32 %v343, 1.0
    %v345 = vmul.f32 %v344, 0.5
    %v346 = vsel %vm63, %v345, %v343
    %v348 = vrot.slane %v310, 6
    %v350 = vmul.f32 %v346, %v348
    %352 = vrot.lane.b32.xlu0 %v346, 32
    %v353 = vpop.permute.xlu0 %352
    %v355 = vmul.f32 %v346, %v353
    %357 = vrot.lane.b32.xlu0 %v355, 32
    %v358 = vpop.permute.xlu0 %357
    %v360 = vadd.f32 %v350, %v358
    %v361 = vtanh.pop %v360
    %363 = vrot.lane.b32.xlu0 %v361, 32
    %v364 = vpop.permute.xlu0 %363
    %v366 = vmul.f32 %v346, %v364
    %v367 = vpack.c.bf16 %v366, %v366
    %v369 = vrot.slane %v367, 1
    %370 = vrot.lane.b32.xlu0 %v369, 64
    %v371 = vpop.permute.xlu0 %370
    %v373 = vsel %vm76, %v371, 0
    %375 = vmatpush.bf16.msra.mxu0 0
    %376 = vmatpush.bf16.msra.mxu0 0
    %377 = vmatpush.bf16.msra.mxu0 0
    %378 = vmatpush.bf16.msra.mxu0 0
    %379 = vmatpush.bf16.msra.mxu0 0
    %380 = vmatpush.bf16.msra.mxu0 0
    %381 = vmatpush.bf16.msra.mxu0 %v73
    %382 = vmatpush.bf16.msra.mxu0 %v72
    %383 = vmatmul.bf16.gmra.mxu0 %v373
    %v384 = vpop.f32.mrf.mxu0
    %v385 = vadd.f32 0.0, %v384
    %v386 = vpop.f32.mrf.mxu0
    %387 = vdwg.mxu0
    %v389 = vrot.slane %v385, 4
    %v391 = vadd.f32 %v59, %v389
    %v392 = vmul.f32 %v391, 0.5
    %v393 = vsel %vm63, %v392, %v391
    %v394 = vtanh.pop %v393
    %v395 = vadd.f32 %v394, 1.0
    %v396 = vmul.f32 %v395, 0.5
    %v397 = vsel %vm63, %v396, %v394
    %v399 = vrot.slane %v360, 6
    %v401 = vmul.f32 %v397, %v399
    %403 = vrot.lane.b32.xlu0 %v397, 32
    %v404 = vpop.permute.xlu0 %403
    %v406 = vmul.f32 %v397, %v404
    %408 = vrot.lane.b32.xlu0 %v406, 32
    %v409 = vpop.permute.xlu0 %408
    %v411 = vadd.f32 %v401, %v409
    %v412 = vtanh.pop %v411
    %414 = vrot.lane.b32.xlu0 %v412, 32
    %v415 = vpop.permute.xlu0 %414
    %v417 = vmul.f32 %v397, %v415
    %v418 = vpack.c.bf16 %v417, %v417
    %v420 = vrot.slane %v418, 2
    %421 = vrot.lane.b32.xlu0 %v420, 64
    %v422 = vpop.permute.xlu0 %421
    %v424 = vsel %vm76, %v422, 0
    %426 = vmatpush.bf16.msra.mxu0 0
    %427 = vmatpush.bf16.msra.mxu0 0
    %428 = vmatpush.bf16.msra.mxu0 0
    %429 = vmatpush.bf16.msra.mxu0 0
    %430 = vmatpush.bf16.msra.mxu0 0
    %431 = vmatpush.bf16.msra.mxu0 0
    %432 = vmatpush.bf16.msra.mxu0 %v73
    %433 = vmatpush.bf16.msra.mxu0 %v72
    %434 = vmatmul.bf16.gmra.mxu0 %v424
    %v435 = vpop.f32.mrf.mxu0
    %v436 = vadd.f32 0.0, %v435
    %v437 = vpop.f32.mrf.mxu0
    %438 = vdwg.mxu0
    %v440 = vrot.slane %v436, 2
    %v442 = vadd.f32 %v59, %v440
    %v443 = vmul.f32 %v442, 0.5
    %v444 = vsel %vm63, %v443, %v442
    %v445 = vtanh.pop %v444
    %v446 = vadd.f32 %v445, 1.0
    %v447 = vmul.f32 %v446, 0.5
    %v448 = vsel %vm63, %v447, %v445
    %v450 = vrot.slane %v411, 6
    %v452 = vmul.f32 %v448, %v450
    %454 = vrot.lane.b32.xlu0 %v448, 32
    %v455 = vpop.permute.xlu0 %454
    %v457 = vmul.f32 %v448, %v455
    %459 = vrot.lane.b32.xlu0 %v457, 32
    %v460 = vpop.permute.xlu0 %459
    %v462 = vadd.f32 %v452, %v460
    %v463 = vtanh.pop %v462
    %465 = vrot.lane.b32.xlu0 %v463, 32
    %v466 = vpop.permute.xlu0 %465
    %v468 = vmul.f32 %v448, %v466
    %v469 = vld [vmem:[%s4] sm:$0x1]
    %v471 = vperm.slane %v469, 0
    %472 = vrot.lane.b32.xlu0 %v471, 64
    %v473 = vpop.permute.xlu0 %472
    %v475 = vmul.f32 %v468, %v473
    %477 = vrot.lane.b32.xlu0 %v475, 64
    %v478 = vpop.permute.xlu0 %477
    %vm480 = vcmask 261126
    %v481 = vsel %vm480, %v478, 0.0
    %482 = vadd.xlane.f32.xlu0 %v481
    %v483 = vpop.xlane.xlu0 %482
    %v484 = vld [vmem:[#allocation2] sm:$0x1]
    %v486 = vperm.slane %v484, 0
    %v488 = vadd.f32 %v483, %v486
    %490 = vset.pattern.permute.xlu0 0
    %491 = vperm.xlu0 %490, %v488
    %v492 = vpop.permute.xlu0 %491
    %494 = vst [vmem:[#allocation3 - $0x6] sm:$0xc0] %v492
    // Predicated region
    $region26: #{tpu_custom_call.1} parent=1 // pred_check
      _
    $region27: #{tpu_custom_call.1} parent=1 // pred_check_branch
      %496 = sbr.rel (0) target = $region29
    $region28: #{tpu_custom_call.1} parent=1 // pred_region
      %498 = vsyncadd [#allocation4], 0
      %s500 = sshll.u32 [#allocation3], 4
      %s501 = int_to_ptr.vmem [resolvable:$true] %s500
      %s502 = sshll.u32 %s6, 4
      %s503 = int_to_ptr.hbm [resolvable:$true] %s502
      %505 = dma.vmem_to_hbm [thread:$0]  %s501, 32, %s503, [#allocation4]
    $region29: #{tpu_custom_call.1} parent=1 // pred_fallthru
      _
    // Predicated region
    $region30: #{tpu_custom_call.1} parent=1 // pred_check
      _
    $region31: #{tpu_custom_call.1} parent=1 // pred_check_branch
      %507 = sbr.rel (0) target = $region33
    $region32: #{tpu_custom_call.1} parent=1 // pred_region
      %509 = dma.done [#allocation4], 32
    $region33: #{tpu_custom_call.1} parent=1 // pred_fallthru
      _
    %510 = vsyncpa [#allocation4], 1

</llo_original>
